<compile_context>
chip_gen: v5e
topology: v5e:2x2
jax: 0.10.0
libtpu: 0.0.40
codegen_flags: <defaults>
</compile_context>

<pallas_src>
import functools
import math

import jax
import jax.numpy as jnp
from jax.experimental import pallas as pl
from jax.experimental.pallas import tpu as pltpu

_MIB = 1024 * 1024
_SQRT_2_OVER_PI = math.sqrt(2.0 / math.pi)


def _gelu_new(x):
    # HF ACT2FN["gelu_new"] (tanh approximation), computed in float32.
    return 0.5 * x * (1.0 + jnp.tanh(_SQRT_2_OVER_PI * (x + 0.044715 * (x * x * x))))


def _round_up(x, n):
    return ((x + n - 1) // n) * n


# -----------------------------------------------------------------------------
# kernels
# -----------------------------------------------------------------------------
def _slab_contribution(x_ref, w_in_ref, b_in_ref, w_out_ref):
    # fc_in slab on the MXU (bf16 in, f32 acc), bias + gelu_new in f32, then
    # this slab's fc_out contribution (bf16 in, f32 acc).
    h = jnp.dot(x_ref[...], w_in_ref[...], preferred_element_type=jnp.float32)
    h = _gelu_new(h + b_in_ref[...])
    return jnp.dot(h.astype(w_out_ref.dtype), w_out_ref[...],
                   preferred_element_type=jnp.float32)


def _mlp_kernel_f32_out(x_ref, w_in_ref, b_in_ref, w_out_ref, b_out_ref, o_ref):
    # f32 output: accumulate directly into the output tile (VMEM-resident
    # across the reduction axis since its block index is constant over k).
    k = pl.program_id(1)

    @pl.when(k == 0)
    def _():
        o_ref[...] = jnp.zeros_like(o_ref)

    o_ref[...] += _slab_contribution(x_ref, w_in_ref, b_in_ref, w_out_ref)

    @pl.when(k == pl.num_programs(1) - 1)
    def _():
        o_ref[...] = o_ref[...] + b_out_ref[...]   # dropout = identity (eval)


def _mlp_kernel_cast_out(x_ref, w_in_ref, b_in_ref, w_out_ref, b_out_ref,
                         o_ref, acc_ref):
    # non-f32 output: accumulate in an f32 VMEM scratch, cast once at the end.
    k = pl.program_id(1)

    @pl.when(k == 0)
    def _():
        acc_ref[...] = jnp.zeros_like(acc_ref)

    acc_ref[...] += _slab_contribution(x_ref, w_in_ref, b_in_ref, w_out_ref)

    @pl.when(k == pl.num_programs(1) - 1)
    def _():
        o_ref[...] = (acc_ref[...] + b_out_ref[...]).astype(o_ref.dtype)


# -----------------------------------------------------------------------------
# tile / chip heuristics
# -----------------------------------------------------------------------------
def _chip_info():
    kind = ""
    try:
        kind = jax.devices()[0].device_kind.lower()
    except Exception:
        pass
    vmem_bytes = 64 * _MIB if "v7" in kind else 128 * _MIB
    try:
        vmem_bytes = int(getattr(pltpu.get_tpu_info(), "vmem_capacity_bytes",
                                 vmem_bytes))
    except Exception:
        pass
    return kind, vmem_bytes


def _default_block_m(kind):
    # Arithmetic intensity ~ block_m FLOPs per weight byte (weights are
    # re-streamed once per row tile): size the row tile per generation.
    if "v6" in kind:
        return 1024     # v6e: 918 TF/s vs ~1.4 TB/s -> needs big row tiles
    if "v7" in kind:
        return 512      # v7x: compute-bound already; stay well inside 64 MiB
    return 512          # v5e / unknown: compute-bound + fewer grid steps


def _choose_block_i(i, requested=512, max_block=2048):
    # Keep block_i >= 512 whenever a divisor of I exists (weight-DMA
    # contiguity + fc_out contraction depth); degrade gracefully otherwise.
    if i % 128 != 0 or i <= requested:
        return i
    for b in range(requested, min(i, max_block) + 1, 128):
        if i % b == 0:
            return b
    for b in range(requested - 128, 127, -128):
        if i % b == 0:
            return b
    return i


def _vmem_estimate(block_m, block_i, d, out_bytes, needs_scratch):
    return (
        2 * block_m * d * 2                      # x tiles (bf16, double-buffered)
        + 2 * d * block_i * 2                    # W_in slabs (bf16)
        + 2 * block_i * d * 2                    # W_out slabs (bf16)
        + 2 * block_i * 4                        # b_in slabs (f32)
        + 2 * d * 4                              # b_out (f32)
        + 2 * block_m * d * out_bytes            # output tiles
        + (block_m * d * 4 if needs_scratch else 0)  # f32 accumulator scratch
        + 2 * block_m * block_i * 4              # live h slab headroom
    )


# -----------------------------------------------------------------------------
# parameter preparation (call ONCE, outside jit / per-call path)
# -----------------------------------------------------------------------------
def prepare_codet5p_mlp_params(w_in, b_in, w_out, b_out, block_i=None):
    """One-time parameter prep: bf16 cast + slab-major fc_in weight layout.

    w_in:  (n_embd, intermediate)   -- pre-transposed vs nn.Linear
    w_out: (intermediate, n_embd)   -- pre-transposed vs nn.Linear
    """
    d, i = w_in.shape
    bi = _choose_block_i(i, 512 if block_i is None else block_i)
    n_slabs = i // bi
    # Slab-major: each (d, bi) fc_in slab becomes one fully contiguous DMA.
    w_in_slabs = jnp.asarray(w_in, jnp.bfloat16).reshape(d, n_slabs, bi)
    w_in_slabs = jnp.transpose(w_in_slabs, (1, 0, 2))        # (n_slabs, d, bi)
    w_out_bf16 = jnp.asarray(w_out, jnp.bfloat16)            # already slab-contiguous
    b_in2d = jnp.asarray(b_in, jnp.float32).reshape(1, i)
    b_out2d = jnp.asarray(b_out, jnp.float32).reshape(1, d)
    return w_in_slabs, b_in2d, w_out_bf16, b_out2d


# -----------------------------------------------------------------------------
# forward
# -----------------------------------------------------------------------------
@functools.partial(jax.jit, static_argnames=("block_m",))
def codet5p_mlp(hidden_states, w_in_slabs, b_in, w_out, b_out, block_m=None):
    """Fused fc_in -> gelu_new -> fc_out (+ identity dropout).

    hidden_states: (..., n_embd); params come from prepare_codet5p_mlp_params.
    Returns the same shape / dtype as hidden_states.
    """
    orig_shape = hidden_states.shape
    out_dtype = hidden_states.dtype
    d = orig_shape[-1]
    x2d = hidden_states.reshape(-1, d)
    m = x2d.shape[0]

    n_slabs, d_w, block_i = w_in_slabs.shape
    assert d_w == d, (d_w, d)

    kind, vmem_bytes = _chip_info()
    if block_m is None:
        block_m = _default_block_m(kind)
    block_m = max(16, (block_m // 16) * 16)          # bf16 sublane packing
    block_m = min(block_m, _round_up(m, 16))         # don't exceed (rounded) M

    needs_scratch = out_dtype != jnp.float32
    out_bytes = jnp.dtype(out_dtype).itemsize

    # Per-chip VMEM budget: physical capacity minus headroom for Mosaic
    # internal scratch; shrink the row tile if the footprint would not fit.
    budget = max(vmem_bytes - 16 * _MIB, 32 * _MIB)
    while (block_m > 128 and
           _vmem_estimate(block_m, block_i, d, out_bytes, needs_scratch) > budget):
        block_m = max(128, ((block_m // 2) // 16) * 16)
    vmem_est = _vmem_estimate(block_m, block_i, d, out_bytes, needs_scratch)
    vmem_limit = int(min(budget, max(int(1.25 * vmem_est), 32 * _MIB)))

    # Ragged last row tile handled by Pallas partial-block masking (no pad).
    grid = (pl.cdiv(m, block_m), n_slabs)

    x_bf16 = x2d.astype(jnp.bfloat16)   # activations change per call; cheap cast

    in_specs = [
        pl.BlockSpec((block_m, d), lambda r, k: (r, 0)),           # x tile (k-invariant)
        pl.BlockSpec((None, d, block_i), lambda r, k: (k, 0, 0)),  # W_in slab (contiguous)
        pl.BlockSpec((1, block_i), lambda r, k: (0, k)),           # b_in slab
        pl.BlockSpec((block_i, d), lambda r, k: (k, 0)),           # W_out slab
        pl.BlockSpec((1, d), lambda r, k: (0, 0)),                 # b_out
    ]
    out_spec = pl.BlockSpec((block_m, d), lambda r, k: (r, 0))

    kernel = _mlp_kernel_cast_out if needs_scratch else _mlp_kernel_f32_out
    scratch = [pltpu.VMEM((block_m, d), jnp.float32)] if needs_scratch else []

    out2d = pl.pallas_call(
        kernel,
        out_shape=jax.ShapeDtypeStruct((m, d), out_dtype),
        grid_spec=pltpu.PrefetchScalarGridSpec(
            num_scalar_prefetch=0,
            grid=grid,
            in_specs=in_specs,
            out_specs=out_spec,
            scratch_shapes=scratch,
        ),
        compiler_params=pltpu.CompilerParams(
            dimension_semantics=("parallel", "arbitrary"),
            vmem_limit_bytes=vmem_limit,
        ),
    )(x_bf16, w_in_slabs, b_in, w_out, b_out)

    return out2d.reshape(orig_shape)


def _reference(hidden_states, w_in, b_in, w_out, b_out):
    # Pure-f32 reference of the PyTorch module (eval mode).
    h = hidden_states.astype(jnp.float32) @ w_in.astype(jnp.float32) + b_in
    h = _gelu_new(h)
    y = h @ w_out.astype(jnp.float32) + b_out
    return y.astype(hidden_states.dtype)


if __name__ == "__main__":
    # Small shapes consistent with the module: n_embd=32, intermediate=128.
    batch, seq, n_embd, intermediate = 2, 8, 32, 128

    key = jax.random.PRNGKey(0)
    k_x, k_wi, k_bi, k_wo, k_bo = jax.random.split(key, 5)

    x = jax.random.normal(k_x, (batch, seq, n_embd), dtype=jnp.float32)

    # "nn.Linear"-style params, stored pre-transposed: (in_features, out_features).
    w_in = jax.random.normal(k_wi, (n_embd, intermediate), dtype=jnp.float32) * 0.02
    b_in = jax.random.normal(k_bi, (intermediate,), dtype=jnp.float32) * 0.02
    w_out = jax.random.normal(k_wo, (intermediate, n_embd), dtype=jnp.float32) * 0.02
    b_out = jax.random.normal(k_bo, (n_embd,), dtype=jnp.float32) * 0.02

    # One-time parameter preparation (bf16 cast + slab-major fc_in layout).
    params = prepare_codet5p_mlp_params(w_in, b_in, w_out, b_out)

    out = codet5p_mlp(x, *params)
    out = jax.block_until_ready(out)

    ref = _reference(x, w_in, b_in, w_out, b_out)
    assert out.shape == x.shape, (out.shape, x.shape)
    assert out.dtype == x.dtype
    # bf16 matmuls with f32 accumulation: loosened tolerance vs pure-f32 ref.
    assert jnp.allclose(out, ref, atol=2e-2, rtol=2e-2), "mismatch vs reference"

    print("KERNEL_OK")
</pallas_src>

<mosaic_0001>
module attributes {stable_mosaic.version = 11 : i64} {
  func.func @_mlp_kernel_f32_out(%arg0: i32, %arg1: i32, %arg2: memref<16x32xbf16, #tpu.memory_space<vmem>>, %arg3: memref<1x32x128xbf16, #tpu.memory_space<vmem>>, %arg4: memref<1x128xf32, #tpu.memory_space<vmem>>, %arg5: memref<128x32xbf16, #tpu.memory_space<vmem>>, %arg6: memref<1x32xf32, #tpu.memory_space<vmem>>, %arg7: memref<16x32xf32, #tpu.memory_space<vmem>>) attributes {dimension_semantics = [#tpu.dimension_semantics<parallel>, #tpu.dimension_semantics<arbitrary>], iteration_bounds = array<i64: 1, 1>, scalar_prefetch = 0 : i64, scratch_operands = 0 : i64, tpu.core_type = #tpu.core_type<tc>, window_params = [{transform_indices = @transform_0, window_bounds = array<i64: 16, 32>}, {transform_indices = @transform_1, window_bounds = array<i64: 1, 32, 128>}, {transform_indices = @transform_2, window_bounds = array<i64: 1, 128>}, {transform_indices = @transform_3, window_bounds = array<i64: 128, 32>}, {pipeline_mode = #tpu.pipeline_mode<synchronous>, transform_indices = @transform_4, window_bounds = array<i64: 1, 32>}, {transform_indices = @transform_5, window_bounds = array<i64: 16, 32>}]} {
    %c0_i32 = arith.constant 0 : i32
    %0 = arith.cmpi eq, %arg1, %c0_i32 : i32
    %1 = arith.extui %0 : i1 to i32
    %c0_i32_0 = arith.constant 0 : i32
    %2 = arith.cmpi ne, %1, %c0_i32_0 : i32
    scf.if %2 {
      %cst_20 = arith.constant 0.000000e+00 : f32
      %32 = vector.broadcast %cst_20 : f32 to vector<16x32xf32>
      %c0_21 = arith.constant 0 : index
      %c0_22 = arith.constant 0 : index
      %33 = vector.load %arg7[%c0_21, %c0_22] : memref<16x32xf32, #tpu.memory_space<vmem>>, vector<16x32xf32>
      tpu.vector_store %arg7[%c0_21, %c0_22], %32 {strides = array<i32>} : memref<16x32xf32, #tpu.memory_space<vmem>>, vector<16x32xf32>,
    } else {
    }
    %c0 = arith.constant 0 : index
    %c0_1 = arith.constant 0 : index
    %3 = vector.load %arg7[%c0, %c0_1] : memref<16x32xf32, #tpu.memory_space<vmem>>, vector<16x32xf32>
    %c0_2 = arith.constant 0 : index
    %c0_3 = arith.constant 0 : index
    %4 = vector.load %arg2[%c0_2, %c0_3] : memref<16x32xbf16, #tpu.memory_space<vmem>>, vector<16x32xbf16>
    %c0_4 = arith.constant 0 : index
    %c0_5 = arith.constant 0 : index
    %c0_6 = arith.constant 0 : index
    %5 = vector.load %arg3[%c0_4, %c0_5, %c0_6] : memref<1x32x128xbf16, #tpu.memory_space<vmem>>, vector<1x32x128xbf16>
    %6 = vector.shape_cast %5 : vector<1x32x128xbf16> to vector<32x128xbf16>
    %cst = arith.constant dense<0.000000e+00> : vector<16x128xf32>
    %7 = tpu.matmul %4, %6, %cst {dimension_numbers = #tpu.dot_dimension_numbers<[1], [0], [0], [1], [0, 0, 1, 1], [], []>} : vector<16x32xbf16>, vector<32x128xbf16>, vector<16x128xf32> -> vector<16x128xf32>
    %c0_7 = arith.constant 0 : index
    %c0_8 = arith.constant 0 : index
    %8 = vector.load %arg4[%c0_7, %c0_8] : memref<1x128xf32, #tpu.memory_space<vmem>>, vector<1x128xf32>
    %9 = vector.broadcast %8 : vector<1x128xf32> to vector<16x128xf32>
    %10 = arith.addf %7, %9 : vector<16x128xf32>
    %cst_9 = arith.constant 5.000000e-01 : f32
    %11 = vector.broadcast %cst_9 : f32 to vector<16x128xf32>
    %12 = arith.mulf %11, %10 : vector<16x128xf32>
    %13 = arith.mulf %10, %10 : vector<16x128xf32>
    %14 = arith.mulf %13, %10 : vector<16x128xf32>
    %cst_10 = arith.constant 4.471500e-02 : f32
    %15 = vector.broadcast %cst_10 : f32 to vector<16x128xf32>
    %16 = arith.mulf %15, %14 : vector<16x128xf32>
    %17 = arith.addf %10, %16 : vector<16x128xf32>
    %cst_11 = arith.constant 0.797884583 : f32
    %18 = vector.broadcast %cst_11 : f32 to vector<16x128xf32>
    %19 = arith.mulf %18, %17 : vector<16x128xf32>
    %20 = math.tanh %19 : vector<16x128xf32>
    %cst_12 = arith.constant 1.000000e+00 : f32
    %21 = vector.broadcast %cst_12 : f32 to vector<16x128xf32>
    %22 = arith.addf %21, %20 : vector<16x128xf32>
    %23 = arith.mulf %12, %22 : vector<16x128xf32>
    %24 = arith.truncf %23 : vector<16x128xf32> to vector<16x128xbf16>
    %c0_13 = arith.constant 0 : index
    %c0_14 = arith.constant 0 : index
    %25 = vector.load %arg5[%c0_13, %c0_14] : memref<128x32xbf16, #tpu.memory_space<vmem>>, vector<128x32xbf16>
    %cst_15 = arith.constant dense<0.000000e+00> : vector<16x32xf32>
    %26 = tpu.matmul %24, %25, %cst_15 {dimension_numbers = #tpu.dot_dimension_numbers<[1], [0], [0], [1], [0, 0, 1, 1], [], []>} : vector<16x128xbf16>, vector<128x32xbf16>, vector<16x32xf32> -> vector<16x32xf32>
    %27 = arith.addf %3, %26 : vector<16x32xf32>
    %c0_16 = arith.constant 0 : index
    %c0_17 = arith.constant 0 : index
    %28 = vector.load %arg7[%c0_16, %c0_17] : memref<16x32xf32, #tpu.memory_space<vmem>>, vector<16x32xf32>
    tpu.vector_store %arg7[%c0_16, %c0_17], %27 {strides = array<i32>} : memref<16x32xf32, #tpu.memory_space<vmem>>, vector<16x32xf32>,
    %c0_i32_18 = arith.constant 0 : i32
    %29 = arith.cmpi eq, %arg1, %c0_i32_18 : i32
    %30 = arith.extui %29 : i1 to i32
    %c0_i32_19 = arith.constant 0 : i32
    %31 = arith.cmpi ne, %30, %c0_i32_19 : i32
    scf.if %31 {
      %c0_20 = arith.constant 0 : index
      %c0_21 = arith.constant 0 : index
      %32 = vector.load %arg7[%c0_20, %c0_21] : memref<16x32xf32, #tpu.memory_space<vmem>>, vector<16x32xf32>
      %c0_22 = arith.constant 0 : index
      %c0_23 = arith.constant 0 : index
      %33 = vector.load %arg6[%c0_22, %c0_23] : memref<1x32xf32, #tpu.memory_space<vmem>>, vector<1x32xf32>
      %34 = vector.broadcast %33 : vector<1x32xf32> to vector<16x32xf32>
      %35 = arith.addf %32, %34 : vector<16x32xf32>
      %c0_24 = arith.constant 0 : index
      %c0_25 = arith.constant 0 : index
      %36 = vector.load %arg7[%c0_24, %c0_25] : memref<16x32xf32, #tpu.memory_space<vmem>>, vector<16x32xf32>
      tpu.vector_store %arg7[%c0_24, %c0_25], %35 {strides = array<i32>} : memref<16x32xf32, #tpu.memory_space<vmem>>, vector<16x32xf32>,
    } else {
    }
    return
  }
  func.func @transform_0(%arg0: i32, %arg1: i32) -> (i32, i32) {
    %c0_i32 = arith.constant 0 : i32
    %c0_i32_0 = arith.constant 0 : i32
    return %arg0, %c0_i32 : i32, i32
  }
  func.func @transform_1(%arg0: i32, %arg1: i32) -> (i32, i32, i32) {
    %c0_i32 = arith.constant 0 : i32
    %c0_i32_0 = arith.constant 0 : i32
    %c0_i32_1 = arith.constant 0 : i32
    return %arg1, %c0_i32, %c0_i32_0 : i32, i32, i32
  }
  func.func @transform_2(%arg0: i32, %arg1: i32) -> (i32, i32) {
    %c0_i32 = arith.constant 0 : i32
    %c0_i32_0 = arith.constant 0 : i32
    return %c0_i32, %arg1 : i32, i32
  }
  func.func @transform_3(%arg0: i32, %arg1: i32) -> (i32, i32) {
    %c0_i32 = arith.constant 0 : i32
    %c0_i32_0 = arith.constant 0 : i32
    return %arg1, %c0_i32 : i32, i32
  }
  func.func @transform_4(%arg0: i32, %arg1: i32) -> (i32, i32) {
    %c0_i32 = arith.constant 0 : i32
    %c0_i32_0 = arith.constant 0 : i32
    %c0_i32_1 = arith.constant 0 : i32
    return %c0_i32, %c0_i32_0 : i32, i32
  }
  func.func @transform_5(%arg0: i32, %arg1: i32) -> (i32, i32) {
    %c0_i32 = arith.constant 0 : i32
    %c0_i32_0 = arith.constant 0 : i32
    return %arg0, %c0_i32 : i32, i32
  }
}

</mosaic_0001>

<llo_original>
// kernel: codet5p_mlp.1
$region0: #{codet5p_mlp.1}
  #allocation0 [shape = 'u32[]', space=smem, size = 0x4, offset = 0x4, fixed_abs, tag = 'smem constant byte address 0x4 - core index']
  #allocation1 [shape = 'u32[72,128]{1,0:T(1,128)}', space=vmem, size = 0x9000, scoped, tag = 'internal scratch']
  %s0 = inlined_call_operand.vmem [shape: bf16[16,32], index: 0, kind: input, shape index: {}]
  %s1 = inlined_call_operand.vmem [shape: bf16[1,32,128], index: 1, kind: input, shape index: {}]
  %s2 = inlined_call_operand.vmem [shape: f32[1,128], index: 2, kind: input, shape index: {}]
  %s3 = inlined_call_operand.vmem [shape: bf16[128,32], index: 3, kind: input, shape index: {}]
  %s4 = inlined_call_operand.vmem [shape: f32[1,32], index: 4, kind: input, shape index: {}]
  %s5 = inlined_call_operand.hbm [shape: f32[16,32], index: 5, kind: output, shape index: {}]
  %s6 = sld [smem:[#allocation0]]
  $region38: #{codet5p_mlp.1} parent=0
    _
  %s8 = ssub.s32 1, %s6
  %s9 = scalar_select 0, %s8, %s6
  $region1: #{codet5p_mlp.1} parent=0
    #allocation2 [shape = 'u8[8192]{0}', space=vmem, size = 0x2000, scoped, tag = 'output window, operand 0, single buffered']
    #allocation3 [shape = 's32[1]{0}', space=sflag, size = 0x4, scoped, tag = 'scoped memory for codet5p_mlp.1']
    %10 = vsyncpa [#allocation3], 0
    // Predicated region
    $region2: #{codet5p_mlp.1} parent=1 // pred_check
      _
    $region3: #{codet5p_mlp.1} parent=1 // pred_check_branch
      %12 = sbr.rel (0) target = $region5
    $region4: #{codet5p_mlp.1} parent=1 // pred_region
      _
    $region5: #{codet5p_mlp.1} parent=1 // pred_fallthru
      _
    // Predicated region
    $region6: #{codet5p_mlp.1} parent=1 // pred_check
      _
    $region7: #{codet5p_mlp.1} parent=1 // pred_check_branch
      %14 = sbr.rel (0) target = $region9
    $region8: #{codet5p_mlp.1} parent=1 // pred_region
      _
    $region9: #{codet5p_mlp.1} parent=1 // pred_fallthru
      _
    // Predicated region
    $region10: #{codet5p_mlp.1} parent=1 // pred_check
      _
    $region11: #{codet5p_mlp.1} parent=1 // pred_check_branch
      %16 = sbr.rel (0) target = $region13
    $region12: #{codet5p_mlp.1} parent=1 // pred_region
      _
    $region13: #{codet5p_mlp.1} parent=1 // pred_fallthru
      _
    // Predicated region
    $region14: #{codet5p_mlp.1} parent=1 // pred_check
      _
    $region15: #{codet5p_mlp.1} parent=1 // pred_check_branch
      %18 = sbr.rel (0) target = $region17
    $region16: #{codet5p_mlp.1} parent=1 // pred_region
      _
    $region17: #{codet5p_mlp.1} parent=1 // pred_fallthru
      _
    // Predicated region
    $region18: #{codet5p_mlp.1} parent=1 // pred_check
      _
    $region19: #{codet5p_mlp.1} parent=1 // pred_check_branch
      %20 = sbr.rel (0) target = $region21
    $region20: #{codet5p_mlp.1} parent=1 // pred_region
      _
    $region21: #{codet5p_mlp.1} parent=1 // pred_fallthru
      _
    %p22 = scmp.eq.s32.totalorder 0, 0
    // Predicated region
    $region22: #{codet5p_mlp.1} parent=1 // pred_check
      %p23 = pneg %p22
    $region23: #{codet5p_mlp.1} parent=1 // pred_check_branch
      %25 = sbr.rel (%p23) target = $region25
    $region24: #{codet5p_mlp.1} parent=1 // pred_region
      %vm26 = vcmask 261120
      %27 = vst.msk [vmem:[#allocation2] sm:$0xff] %vm26, 0.0
      %28 = vst.msk [vmem:[#allocation2 + $0x8] sm:$0xff] %vm26, 0.0
    $region25: #{codet5p_mlp.1} parent=1 // pred_fallthru
      _
    %v29 = vld [vmem:[#allocation2] sm:$0xff]
    %v30 = vld [vmem:[#allocation2 + $0x8] sm:$0xff]
    %v31 = vld [vmem:[%s0] sm:$0xf]
    %v32 = vld [vmem:[%s0 + $0x4] sm:$0xf]
    %v33 = vld [vmem:[%s1] sm:$0xf]
    %v34 = vld [vmem:[%s1 + $0x4] sm:$0xf]
    %v35 = vld [vmem:[%s1 + $0x8] sm:$0xf]
    %v36 = vld [vmem:[%s1 + $0xc] sm:$0xf]
    %v37 = vld [vmem:[%s2] sm:$0x1]
    %v39 = vperm.slane %v37, 0
    %v43 = vunpack.c.l.b16 %v31
    %v44 = vunpack.c.l.b16 %v32
    %v45 = vpack.c.b16 %v44, %v43
    %v50 = vunpack.c.l.b16 %v33
    %v51 = vunpack.c.l.b16 %v34
    %v52 = vunpack.c.l.b16 %v35
    %v53 = vunpack.c.l.b16 %v36
    %v54 = vpack.c.b16 %v51, %v50
    %v55 = vpack.c.b16 %v53, %v52
    %vm58 = vcmask 261120
    %v60 = vsel %vm58, %v45, 0
    %62 = vmatpush.bf16.msra.mxu0 0
    %63 = vmatpush.bf16.msra.mxu0 0
    %64 = vmatpush.bf16.msra.mxu0 0
    %65 = vmatpush.bf16.msra.mxu0 0
    %66 = vmatpush.bf16.msra.mxu0 0
    %67 = vmatpush.bf16.msra.mxu0 0
    %68 = vmatpush.bf16.msra.mxu0 %v55
    %69 = vmatpush.bf16.msra.mxu0 %v54
    %70 = vmatmul.bf16.gmra.mxu0 %v60
    %v71 = vpop.f32.mrf.mxu0
    %v72 = vadd.f32 %v39, %v71
    %v73 = vpop.f32.mrf.mxu0
    %v74 = vadd.f32 %v39, %v73
    %75 = vdwg.mxu0
    %v76 = vmul.f32 %v72, 0.5
    %v77 = vmul.f32 %v74, 0.5
    %v78 = vmul.f32 %v72, %v72
    %v79 = vmul.f32 %v74, %v74
    %v80 = vmul.f32 %v78, %v72
    %v81 = vmul.f32 %v79, %v74
    %v82 = vmul.f32 %v80, 0.044715
    %v83 = vmul.f32 %v81, 0.044715
    %v84 = vadd.f32 %v72, %v82
    %v85 = vadd.f32 %v74, %v83
    %v86 = vmul.f32 %v84, 0.7978846
    %v87 = vmul.f32 %v85, 0.7978846
    %v88 = vtanh.pop %v86
    %v89 = vtanh.pop %v87
    %v90 = vadd.f32 %v88, 1.0
    %v91 = vadd.f32 %v89, 1.0
    %v92 = vmul.f32 %v76, %v90
    %v93 = vmul.f32 %v77, %v91
    %v94 = vpack.c.bf16 %v93, %v92
    %v95 = vld [vmem:[%s3] sm:$0xf]
    %v96 = vld [vmem:[%s3 + $0x4] sm:$0xf]
    %v97 = vld [vmem:[%s3 + $0x8] sm:$0xf]
    %v98 = vld [vmem:[%s3 + $0xc] sm:$0xf]
    %v99 = vld [vmem:[%s3 + $0x10] sm:$0xf]
    %v100 = vld [vmem:[%s3 + $0x14] sm:$0xf]
    %v101 = vld [vmem:[%s3 + $0x18] sm:$0xf]
    %v102 = vld [vmem:[%s3 + $0x1c] sm:$0xf]
    %v103 = vld [vmem:[%s3 + $0x20] sm:$0xf]
    %v104 = vld [vmem:[%s3 + $0x24] sm:$0xf]
    %v105 = vld [vmem:[%s3 + $0x28] sm:$0xf]
    %v106 = vld [vmem:[%s3 + $0x2c] sm:$0xf]
    %v107 = vld [vmem:[%s3 + $0x30] sm:$0xf]
    %v108 = vld [vmem:[%s3 + $0x34] sm:$0xf]
    %v109 = vld [vmem:[%s3 + $0x38] sm:$0xf]
    %v110 = vld [vmem:[%s3 + $0x3c] sm:$0xf]
    %v127 = vunpack.c.l.b16 %v95
    %v128 = vunpack.c.l.b16 %v96
    %v129 = vunpack.c.l.b16 %v97
    %v130 = vunpack.c.l.b16 %v98
    %v131 = vunpack.c.l.b16 %v99
    %v132 = vunpack.c.l.b16 %v100
    %v133 = vunpack.c.l.b16 %v101
    %v134 = vunpack.c.l.b16 %v102
    %v135 = vunpack.c.l.b16 %v103
    %v136 = vunpack.c.l.b16 %v104
    %v137 = vunpack.c.l.b16 %v105
    %v138 = vunpack.c.l.b16 %v106
    %v139 = vunpack.c.l.b16 %v107
    %v140 = vunpack.c.l.b16 %v108
    %v141 = vunpack.c.l.b16 %v109
    %v142 = vunpack.c.l.b16 %v110
    %v143 = vpack.c.b16 %v128, %v127
    %v144 = vpack.c.b16 %v130, %v129
    %v145 = vpack.c.b16 %v132, %v131
    %v146 = vpack.c.b16 %v134, %v133
    %v147 = vpack.c.b16 %v136, %v135
    %v148 = vpack.c.b16 %v138, %v137
    %v149 = vpack.c.b16 %v140, %v139
    %v150 = vpack.c.b16 %v142, %v141
    %159 = vmatpush.bf16.msra.mxu0 %v150
    %160 = vmatpush.bf16.msra.mxu0 %v149
    %161 = vmatpush.bf16.msra.mxu0 %v148
    %162 = vmatpush.bf16.msra.mxu0 %v147
    %163 = vmatpush.bf16.msra.mxu0 %v146
    %164 = vmatpush.bf16.msra.mxu0 %v145
    %165 = vmatpush.bf16.msra.mxu0 %v144
    %166 = vmatpush.bf16.msra.mxu0 %v143
    %167 = vmatmul.bf16.gmra.mxu0 %v94
    %v168 = vpop.f32.mrf.mxu0
    %v169 = vadd.f32 0.0, %v168
    %v170 = vpop.f32.mrf.mxu0
    %v171 = vadd.f32 0.0, %v170
    %172 = vdwg.mxu0
    %v173 = vadd.f32 %v29, %v169
    %v174 = vadd.f32 %v30, %v171
    %175 = vst.msk [vmem:[#allocation2] sm:$0xff] %vm58, %v173
    %176 = vst.msk [vmem:[#allocation2 + $0x8] sm:$0xff] %vm58, %v174
    // Predicated region
    $region26: #{codet5p_mlp.1} parent=1 // pred_check
      %p177 = pneg %p22
    $region27: #{codet5p_mlp.1} parent=1 // pred_check_branch
      %179 = sbr.rel (%p177) target = $region29
    $region28: #{codet5p_mlp.1} parent=1 // pred_region
      %v180 = vld [vmem:[#allocation2] sm:$0xff]
      %v181 = vld [vmem:[#allocation2 + $0x8] sm:$0xff]
      %v182 = vld [vmem:[%s4] sm:$0x1]
      %v184 = vperm.slane %v182, 0
      %v186 = vadd.f32 %v180, %v184
      %v187 = vadd.f32 %v181, %v184
      %188 = vst.msk [vmem:[#allocation2] sm:$0xff] %vm58, %v186
      %189 = vst.msk [vmem:[#allocation2 + $0x8] sm:$0xff] %vm58, %v187
    $region29: #{codet5p_mlp.1} parent=1 // pred_fallthru
      _
    // Predicated region
    $region30: #{codet5p_mlp.1} parent=1 // pred_check
      _
    $region31: #{codet5p_mlp.1} parent=1 // pred_check_branch
      %191 = sbr.rel (0) target = $region33
    $region32: #{codet5p_mlp.1} parent=1 // pred_region
      %193 = vsyncadd [#allocation3], 0
      %s194 = sshll.u32 [#allocation2], 4
      %s195 = int_to_ptr.vmem [resolvable:$true] %s194
      %s196 = sshll.u32 %s5, 4
      %s197 = int_to_ptr.hbm [resolvable:$true] %s196
      %202 = dma.vmem_to_hbm [thread:$0]  %s195, 256, %s197, [#allocation3], 128, 128, 8
    $region33: #{codet5p_mlp.1} parent=1 // pred_fallthru
      _
    // Predicated region
    $region34: #{codet5p_mlp.1} parent=1 // pred_check
      _
    $region35: #{codet5p_mlp.1} parent=1 // pred_check_branch
      %204 = sbr.rel (0) target = $region37
    $region36: #{codet5p_mlp.1} parent=1 // pred_region
      %206 = dma.done [#allocation3], 256
    $region37: #{codet5p_mlp.1} parent=1 // pred_fallthru
      _
    %207 = vsyncpa [#allocation3], 1

</llo_original>
